<compile_context>
chip_gen: v5e
topology: v5e:2x2
jax: 0.10.0
libtpu: 0.0.40
codegen_flags: <defaults>
</compile_context>

<pallas_src>
import jax
import jax.numpy as jnp
from jax.experimental import pallas as pl
from jax.experimental.pallas import tpu as pltpu


_TILE_B_MAX = 128   # batch tile (multiple of 8)
_TK_MAX = 512       # reduction (C*H*W) tile (multiple of 128)


def _round_up(x, m):
    return (x + m - 1) // m * m


def _extension_kernel(x_ref, we_ref, be_ref, w1_ref, b1_ref, w2_ref, b2_ref,
                      o_ref, acc_ref):
    """Grid = (batch_tiles, k_tiles).  K is the reduction of the 1st matmul."""
    k = pl.program_id(1)

    @pl.when(k == 0)
    def _():
        acc_ref[...] = jnp.zeros_like(acc_ref)

    # encoder partial product: (TILE_B, TK)bf16 @ (TK, D_ENC_PAD)bf16 -> f32
    acc_ref[...] += jnp.dot(x_ref[...], we_ref[...],
                            preferred_element_type=jnp.float32)

    @pl.when(k == pl.num_programs(1) - 1)
    def _():
        # finalize encoder in fp32, then run the two small layers (resident
        # weights) and store a lane-dense output tile.
        feat = acc_ref[...] + be_ref[...]                       # fp32 bias add
        h = jnp.dot(feat.astype(jnp.bfloat16), w1_ref[...],
                    preferred_element_type=jnp.float32) + b1_ref[...]
        h = jnp.maximum(h, 0.0)                                 # fp32 ReLU
        out = jnp.dot(h.astype(jnp.bfloat16), w2_ref[...],
                      preferred_element_type=jnp.float32) + b2_ref[...]
        o_ref[...] = out.astype(o_ref.dtype)


def prepare_params(params):
    """One-time weight preparation (NOT in the per-call hot path):
    pad to 128-multiples, transpose to (in, out) for MXU, cast to bf16."""
    enc_w = params["enc_w"]          # (D_enc, C*H*W)  PyTorch layout
    d_enc, chw = enc_w.shape
    d_req = params["lin_w"].shape[0]

    tk = min(_TK_MAX, _round_up(chw, 128))
    chw_pad = _round_up(chw, tk)
    d_enc_pad = _round_up(d_enc, 128)
    d_req_pad = _round_up(d_req, 128)

    we = jnp.pad(enc_w, ((0, d_enc_pad - d_enc), (0, chw_pad - chw)))
    we = we.T.astype(jnp.bfloat16)                               # (chw_pad, d_enc_pad)
    be = jnp.pad(params["enc_b"], (0, d_enc_pad - d_enc)
                 ).reshape(1, -1).astype(jnp.float32)            # (1, d_enc_pad)

    w1 = jnp.pad(params["up_w"], ((0, d_req_pad - d_req), (0, d_enc_pad - d_enc)))
    w1 = w1.T.astype(jnp.bfloat16)                               # (d_enc_pad, d_req_pad)
    b1 = jnp.pad(params["up_b"], (0, d_req_pad - d_req)
                 ).reshape(1, -1).astype(jnp.float32)            # (1, d_req_pad)

    w2 = jnp.pad(params["lin_w"], ((0, d_req_pad - d_req), (0, d_req_pad - d_req)))
    w2 = w2.T.astype(jnp.bfloat16)                               # (d_req_pad, d_req_pad)
    b2 = jnp.pad(params["lin_b"], (0, d_req_pad - d_req)
                 ).reshape(1, -1).astype(jnp.float32)            # (1, d_req_pad)

    return dict(we=we, be=be, w1=w1, b1=b1, w2=w2, b2=b2,
                chw=chw, chw_pad=chw_pad, tk=tk,
                d_enc_pad=d_enc_pad, d_req=d_req, d_req_pad=d_req_pad)


def image_encoder_extension(x_nchw, prepped):
    """Fused forward: encoder(flatten+linear) -> linear_upscale -> ReLU -> linear."""
    B = x_nchw.shape[0]
    chw = prepped["chw"]
    chw_pad = prepped["chw_pad"]
    tk = prepped["tk"]
    d_enc_pad = prepped["d_enc_pad"]
    d_req = prepped["d_req"]
    d_req_pad = prepped["d_req_pad"]

    tile_b = min(_TILE_B_MAX, _round_up(B, 8))
    b_pad = _round_up(B, tile_b)

    x = x_nchw.reshape(B, -1)
    x = jnp.pad(x, ((0, b_pad - B), (0, chw_pad - chw))).astype(jnp.bfloat16)

    grid_b = b_pad // tile_b
    grid_k = chw_pad // tk
    grid = (grid_b, grid_k)

    # ---- VMEM budget (double-buffered grid tiles + resident small weights) ----
    bf16, f32 = 2, 4
    needed = (
        2 * tile_b * tk * bf16              # x tile (double-buffered)
        + 2 * tk * d_enc_pad * bf16         # enc_w tile (double-buffered)
        + 2 * d_enc_pad * d_req_pad * bf16  # w1 (resident)
        + 2 * d_req_pad * d_req_pad * bf16  # w2 (resident)
        + 2 * (d_enc_pad + 2 * d_req_pad) * f32   # biases
        + 2 * tile_b * d_req_pad * f32      # output tile
        + tile_b * d_enc_pad * f32          # fp32 accumulator scratch
    )
    vmem_limit = int(min(max(2 * needed, 16 * 1024 * 1024), 40 * 1024 * 1024))

    # ---- advisory cost estimate for XLA scheduling ----
    flops = 2 * b_pad * (chw_pad * d_enc_pad
                         + d_enc_pad * d_req_pad
                         + d_req_pad * d_req_pad)
    bytes_accessed = (b_pad * chw_pad * bf16
                      + grid_b * chw_pad * d_enc_pad * bf16
                      + d_enc_pad * d_req_pad * bf16
                      + d_req_pad * d_req_pad * bf16
                      + (d_enc_pad + 2 * d_req_pad) * f32
                      + b_pad * d_req_pad * f32)
    cost = pl.CostEstimate(flops=flops, transcendentals=0,
                           bytes_accessed=bytes_accessed)

    out = pl.pallas_call(
        _extension_kernel,
        out_shape=jax.ShapeDtypeStruct((b_pad, d_req_pad), jnp.float32),
        grid_spec=pltpu.PrefetchScalarGridSpec(
            num_scalar_prefetch=0,
            grid=grid,
            in_specs=[
                pl.BlockSpec((tile_b, tk), lambda i, k: (i, k)),            # x
                pl.BlockSpec((tk, d_enc_pad), lambda i, k: (k, 0)),         # enc_w
                pl.BlockSpec((1, d_enc_pad), lambda i, k: (0, 0)),          # enc_b
                pl.BlockSpec((d_enc_pad, d_req_pad), lambda i, k: (0, 0)),  # up_w
                pl.BlockSpec((1, d_req_pad), lambda i, k: (0, 0)),          # up_b
                pl.BlockSpec((d_req_pad, d_req_pad), lambda i, k: (0, 0)),  # lin_w
                pl.BlockSpec((1, d_req_pad), lambda i, k: (0, 0)),          # lin_b
            ],
            out_specs=pl.BlockSpec((tile_b, d_req_pad), lambda i, k: (i, 0)),
            scratch_shapes=[pltpu.VMEM((tile_b, d_enc_pad), jnp.float32)],
        ),
        compiler_params=pltpu.CompilerParams(
            dimension_semantics=("parallel", "arbitrary"),
            vmem_limit_bytes=vmem_limit,
        ),
        cost_estimate=cost,
    )(x, prepped["we"], prepped["be"], prepped["w1"], prepped["b1"],
      prepped["w2"], prepped["b2"])

    return out[:B, :d_req]


def _reference(x_nchw, params):
    B = x_nchw.shape[0]
    x = x_nchw.reshape(B, -1).astype(jnp.float32)
    x = x @ params["enc_w"].T + params["enc_b"]          # encoder
    x = x @ params["up_w"].T + params["up_b"]            # linear_upscale
    x = jnp.maximum(x, 0.0)                              # relu
    x = x @ params["lin_w"].T + params["lin_b"]          # linear
    return x


if __name__ == "__main__":
    # small shapes consistent with the module
    B, C, H, W = 2, 4, 16, 16
    output_dim = 32           # encoder output dim
    required_output_dim = 64

    key = jax.random.PRNGKey(0)
    k = jax.random.split(key, 7)

    x = jax.random.normal(k[0], (B, C, H, W), dtype=jnp.float32)

    in_feat = C * H * W
    params = {
        "enc_w": jax.random.normal(k[1], (output_dim, in_feat), jnp.float32) * 0.02,
        "enc_b": jax.random.normal(k[2], (output_dim,), jnp.float32) * 0.02,
        "up_w":  jax.random.normal(k[3], (required_output_dim, output_dim), jnp.float32) * 0.1,
        "up_b":  jax.random.normal(k[4], (required_output_dim,), jnp.float32) * 0.1,
        "lin_w": jax.random.normal(k[5], (required_output_dim, required_output_dim), jnp.float32) * 0.1,
        "lin_b": jax.random.normal(k[6], (required_output_dim,), jnp.float32) * 0.1,
    }

    prepped = prepare_params(params)            # one-time weight prep (cold path)
    out = image_encoder_extension(x, prepped)   # fused Pallas forward (hot path)
    out = jax.block_until_ready(out)

    ref = _reference(x, params)
    assert out.shape == (B, required_output_dim)
    # bf16 matmul operands (fp32 accumulation) -> slightly looser tolerance
    assert jnp.allclose(out, ref, atol=5e-2, rtol=5e-2), "mismatch vs reference"

    print("KERNEL_OK")
</pallas_src>

<mosaic_0001>
module attributes {stable_mosaic.version = 11 : i64} {
  func.func @_extension_kernel(%arg0: i32, %arg1: i32, %arg2: memref<8x512xbf16, #tpu.memory_space<vmem>>, %arg3: memref<512x128xbf16, #tpu.memory_space<vmem>>, %arg4: memref<1x128xf32, #tpu.memory_space<vmem>>, %arg5: memref<128x128xbf16, #tpu.memory_space<vmem>>, %arg6: memref<1x128xf32, #tpu.memory_space<vmem>>, %arg7: memref<128x128xbf16, #tpu.memory_space<vmem>>, %arg8: memref<1x128xf32, #tpu.memory_space<vmem>>, %arg9: memref<8x128xf32, #tpu.memory_space<vmem>>, %arg10: memref<8x128xf32, #tpu.memory_space<vmem>>) attributes {dimension_semantics = [#tpu.dimension_semantics<parallel>, #tpu.dimension_semantics<arbitrary>], iteration_bounds = array<i64: 1, 2>, scalar_prefetch = 0 : i64, scratch_operands = 1 : i64, tpu.core_type = #tpu.core_type<tc>, window_params = [{transform_indices = @transform_0, window_bounds = array<i64: 8, 512>}, {transform_indices = @transform_1, window_bounds = array<i64: 512, 128>}, {pipeline_mode = #tpu.pipeline_mode<synchronous>, transform_indices = @transform_2, window_bounds = array<i64: 1, 128>}, {pipeline_mode = #tpu.pipeline_mode<synchronous>, transform_indices = @transform_3, window_bounds = array<i64: 128, 128>}, {pipeline_mode = #tpu.pipeline_mode<synchronous>, transform_indices = @transform_4, window_bounds = array<i64: 1, 128>}, {pipeline_mode = #tpu.pipeline_mode<synchronous>, transform_indices = @transform_5, window_bounds = array<i64: 128, 128>}, {pipeline_mode = #tpu.pipeline_mode<synchronous>, transform_indices = @transform_6, window_bounds = array<i64: 1, 128>}, {transform_indices = @transform_7, window_bounds = array<i64: 8, 128>}]} {
    %c0_i32 = arith.constant 0 : i32
    %0 = arith.cmpi eq, %arg1, %c0_i32 : i32
    %1 = arith.extui %0 : i1 to i32
    %c0_i32_0 = arith.constant 0 : i32
    %2 = arith.cmpi ne, %1, %c0_i32_0 : i32
    scf.if %2 {
      %cst_9 = arith.constant 0.000000e+00 : f32
      %12 = vector.broadcast %cst_9 : f32 to vector<8x128xf32>
      %c0_10 = arith.constant 0 : index
      %c0_11 = arith.constant 0 : index
      %13 = vector.load %arg10[%c0_10, %c0_11] : memref<8x128xf32, #tpu.memory_space<vmem>>, vector<8x128xf32>
      tpu.vector_store %arg10[%c0_10, %c0_11], %12 {strides = array<i32>} : memref<8x128xf32, #tpu.memory_space<vmem>>, vector<8x128xf32>,
    } else {
    }
    %c0 = arith.constant 0 : index
    %c0_1 = arith.constant 0 : index
    %3 = vector.load %arg10[%c0, %c0_1] : memref<8x128xf32, #tpu.memory_space<vmem>>, vector<8x128xf32>
    %c0_2 = arith.constant 0 : index
    %c0_3 = arith.constant 0 : index
    %4 = vector.load %arg2[%c0_2, %c0_3] : memref<8x512xbf16, #tpu.memory_space<vmem>>, vector<8x512xbf16>
    %c0_4 = arith.constant 0 : index
    %c0_5 = arith.constant 0 : index
    %5 = vector.load %arg3[%c0_4, %c0_5] : memref<512x128xbf16, #tpu.memory_space<vmem>>, vector<512x128xbf16>
    %cst = arith.constant dense<0.000000e+00> : vector<8x128xf32>
    %6 = tpu.matmul %4, %5, %cst {dimension_numbers = #tpu.dot_dimension_numbers<[1], [0], [0], [1], [0, 0, 1, 1], [], []>} : vector<8x512xbf16>, vector<512x128xbf16>, vector<8x128xf32> -> vector<8x128xf32>
    %7 = arith.addf %3, %6 : vector<8x128xf32>
    %c0_6 = arith.constant 0 : index
    %c0_7 = arith.constant 0 : index
    %8 = vector.load %arg10[%c0_6, %c0_7] : memref<8x128xf32, #tpu.memory_space<vmem>>, vector<8x128xf32>
    tpu.vector_store %arg10[%c0_6, %c0_7], %7 {strides = array<i32>} : memref<8x128xf32, #tpu.memory_space<vmem>>, vector<8x128xf32>,
    %c1_i32 = arith.constant 1 : i32
    %9 = arith.cmpi eq, %arg1, %c1_i32 : i32
    %10 = arith.extui %9 : i1 to i32
    %c0_i32_8 = arith.constant 0 : i32
    %11 = arith.cmpi ne, %10, %c0_i32_8 : i32
    scf.if %11 {
      %c0_9 = arith.constant 0 : index
      %c0_10 = arith.constant 0 : index
      %12 = vector.load %arg10[%c0_9, %c0_10] : memref<8x128xf32, #tpu.memory_space<vmem>>, vector<8x128xf32>
      %c0_11 = arith.constant 0 : index
      %c0_12 = arith.constant 0 : index
      %13 = vector.load %arg4[%c0_11, %c0_12] : memref<1x128xf32, #tpu.memory_space<vmem>>, vector<1x128xf32>
      %14 = vector.broadcast %13 : vector<1x128xf32> to vector<8x128xf32>
      %15 = arith.addf %12, %14 : vector<8x128xf32>
      %16 = arith.truncf %15 : vector<8x128xf32> to vector<8x128xbf16>
      %c0_13 = arith.constant 0 : index
      %c0_14 = arith.constant 0 : index
      %17 = vector.load %arg5[%c0_13, %c0_14] : memref<128x128xbf16, #tpu.memory_space<vmem>>, vector<128x128xbf16>
      %cst_15 = arith.constant dense<0.000000e+00> : vector<8x128xf32>
      %18 = tpu.matmul %16, %17, %cst_15 {dimension_numbers = #tpu.dot_dimension_numbers<[1], [0], [0], [1], [0, 0, 1, 1], [], []>} : vector<8x128xbf16>, vector<128x128xbf16>, vector<8x128xf32> -> vector<8x128xf32>
      %c0_16 = arith.constant 0 : index
      %c0_17 = arith.constant 0 : index
      %19 = vector.load %arg6[%c0_16, %c0_17] : memref<1x128xf32, #tpu.memory_space<vmem>>, vector<1x128xf32>
      %20 = vector.broadcast %19 : vector<1x128xf32> to vector<8x128xf32>
      %21 = arith.addf %18, %20 : vector<8x128xf32>
      %cst_18 = arith.constant 0.000000e+00 : f32
      %22 = vector.broadcast %cst_18 : f32 to vector<8x128xf32>
      %23 = arith.maximumf %21, %22 : vector<8x128xf32>
      %24 = arith.truncf %23 : vector<8x128xf32> to vector<8x128xbf16>
      %c0_19 = arith.constant 0 : index
      %c0_20 = arith.constant 0 : index
      %25 = vector.load %arg7[%c0_19, %c0_20] : memref<128x128xbf16, #tpu.memory_space<vmem>>, vector<128x128xbf16>
      %cst_21 = arith.constant dense<0.000000e+00> : vector<8x128xf32>
      %26 = tpu.matmul %24, %25, %cst_21 {dimension_numbers = #tpu.dot_dimension_numbers<[1], [0], [0], [1], [0, 0, 1, 1], [], []>} : vector<8x128xbf16>, vector<128x128xbf16>, vector<8x128xf32> -> vector<8x128xf32>
      %c0_22 = arith.constant 0 : index
      %c0_23 = arith.constant 0 : index
      %27 = vector.load %arg8[%c0_22, %c0_23] : memref<1x128xf32, #tpu.memory_space<vmem>>, vector<1x128xf32>
      %28 = vector.broadcast %27 : vector<1x128xf32> to vector<8x128xf32>
      %29 = arith.addf %26, %28 : vector<8x128xf32>
      %c0_24 = arith.constant 0 : index
      %c0_25 = arith.constant 0 : index
      %30 = vector.load %arg9[%c0_24, %c0_25] : memref<8x128xf32, #tpu.memory_space<vmem>>, vector<8x128xf32>
      tpu.vector_store %arg9[%c0_24, %c0_25], %29 {strides = array<i32>} : memref<8x128xf32, #tpu.memory_space<vmem>>, vector<8x128xf32>,
    } else {
    }
    return
  }
  func.func @transform_0(%arg0: i32, %arg1: i32) -> (i32, i32) {
    %c0_i32 = arith.constant 0 : i32
    return %arg0, %arg1 : i32, i32
  }
  func.func @transform_1(%arg0: i32, %arg1: i32) -> (i32, i32) {
    %c0_i32 = arith.constant 0 : i32
    %c0_i32_0 = arith.constant 0 : i32
    return %arg1, %c0_i32 : i32, i32
  }
  func.func @transform_2(%arg0: i32, %arg1: i32) -> (i32, i32) {
    %c0_i32 = arith.constant 0 : i32
    %c0_i32_0 = arith.constant 0 : i32
    %c0_i32_1 = arith.constant 0 : i32
    return %c0_i32, %c0_i32_0 : i32, i32
  }
  func.func @transform_3(%arg0: i32, %arg1: i32) -> (i32, i32) {
    %c0_i32 = arith.constant 0 : i32
    %c0_i32_0 = arith.constant 0 : i32
    %c0_i32_1 = arith.constant 0 : i32
    return %c0_i32, %c0_i32_0 : i32, i32
  }
  func.func @transform_4(%arg0: i32, %arg1: i32) -> (i32, i32) {
    %c0_i32 = arith.constant 0 : i32
    %c0_i32_0 = arith.constant 0 : i32
    %c0_i32_1 = arith.constant 0 : i32
    return %c0_i32, %c0_i32_0 : i32, i32
  }
  func.func @transform_5(%arg0: i32, %arg1: i32) -> (i32, i32) {
    %c0_i32 = arith.constant 0 : i32
    %c0_i32_0 = arith.constant 0 : i32
    %c0_i32_1 = arith.constant 0 : i32
    return %c0_i32, %c0_i32_0 : i32, i32
  }
  func.func @transform_6(%arg0: i32, %arg1: i32) -> (i32, i32) {
    %c0_i32 = arith.constant 0 : i32
    %c0_i32_0 = arith.constant 0 : i32
    %c0_i32_1 = arith.constant 0 : i32
    return %c0_i32, %c0_i32_0 : i32, i32
  }
  func.func @transform_7(%arg0: i32, %arg1: i32) -> (i32, i32) {
    %c0_i32 = arith.constant 0 : i32
    %c0_i32_0 = arith.constant 0 : i32
    return %arg0, %c0_i32 : i32, i32
  }
}

</mosaic_0001>

<llo_original>
// kernel: tpu_custom_call.1
$region0: #{tpu_custom_call.1}
  #allocation0 [shape = 'u32[]', space=smem, size = 0x4, offset = 0x4, fixed_abs, tag = 'smem constant byte address 0x4 - core index']
  #allocation1 [shape = 'u32[72,128]{1,0:T(1,128)}', space=vmem, size = 0x9000, scoped, tag = 'internal scratch']
  #allocation2 [shape = 'f32[8,128]{1,0:T(8,128)}', space=vmem, size = 0x1000, scoped, tag = 'scratch operand']
  %s0 = inlined_call_operand.hbm [shape: bf16[8,1024], index: 0, kind: input, shape index: {}]
  %s1 = inlined_call_operand.hbm [shape: bf16[1024,128], index: 1, kind: input, shape index: {}]
  %s2 = inlined_call_operand.vmem [shape: f32[1,128], index: 2, kind: input, shape index: {}]
  %s3 = inlined_call_operand.hbm [shape: bf16[128,128], index: 3, kind: input, shape index: {}]
  %s4 = inlined_call_operand.vmem [shape: f32[1,128], index: 4, kind: input, shape index: {}]
  %s5 = inlined_call_operand.hbm [shape: bf16[128,128], index: 5, kind: input, shape index: {}]
  %s6 = inlined_call_operand.vmem [shape: f32[1,128], index: 6, kind: input, shape index: {}]
  %s7 = inlined_call_operand.hbm [shape: f32[8,128], index: 7, kind: output, shape index: {}]
  %s8 = sld [smem:[#allocation0]]
  $region85: #{tpu_custom_call.1} parent=0
    _
  %s10 = ssub.s32 1, %s8
  %s11 = scalar_select 0, %s10, %s8
  $region1: #{tpu_custom_call.1} parent=0
    #allocation3 [shape = 'u8[16384]{0}', space=vmem, size = 0x4000, scoped, tag = 'input window, operand 0']
    #allocation4 [shape = 's32[2]{0}', space=sflag, size = 0x8, scoped, tag = 'scoped memory for tpu_custom_call.1']
    #allocation5 [shape = 's32[2]{0}', space=sflag, size = 0x8, scoped, tag = 'scoped memory for tpu_custom_call.1']
    #allocation6 [shape = 'u8[262144]{0}', space=vmem, size = 0x40000, scoped, tag = 'input window, operand 1']
    #allocation7 [shape = 's32[2]{0}', space=sflag, size = 0x8, scoped, tag = 'scoped memory for tpu_custom_call.1']
    #allocation8 [shape = 'u8[32768]{0}', space=vmem, size = 0x8000, scoped, tag = 'input window, operand 3, single buffered']
    #allocation9 [shape = 'u8[32768]{0}', space=vmem, size = 0x8000, scoped, tag = 'input window, operand 5, single buffered']
    #allocation10 [shape = 's32[1]{0}', space=sflag, size = 0x4, scoped, tag = 'scoped memory for tpu_custom_call.1']
    #allocation11 [shape = 'u8[4096]{0}', space=vmem, size = 0x1000, scoped, tag = 'output window, operand 0, single buffered']
    %12 = vsyncpa [#allocation4], 0
    %s13 = scalar_lea.sflag [#allocation4], 1
    %14 = vsyncpa %s13, 0
    %15 = vsyncpa [#allocation7], 0
    %s16 = scalar_lea.sflag [#allocation7], 1
    %17 = vsyncpa %s16, 0
    %18 = vsyncpa [#allocation10], 0
    %19 = vsyncpa [#allocation5], 0
    loop: start=0, step=1, limit=4
    $region2: #{tpu_custom_call.1} parent=1 // loop_pre_header
      _
    $region3: #{tpu_custom_call.1} parent=1 // loop_header
      %s21 = sphi 0, %s25
      %p22 = scmp.ge.s32.totalorder %s21, 4
      %s28 = sphi 0, %s40
      %s29 = sphi 0, %s36
      %s30 = sphi 0, %s28
      %s31 = sphi 0, %s29
      %s32 = sphi 0, %s30
      %s33 = sphi 0, %s31
      %s45 = sphi 0, %s47
      %s48 = sphi 0, %s45
      %s49 = sphi 0, %s48
      %s65 = sphi 0, %s49
      %s71 = sphi 0, %s73
      %s74 = sphi 0, %s71
      %s75 = sphi 0, %s74
      %s91 = sphi 0, %s75
      %s95 = sphi 0, %s95
      %s97 = sphi 0, %s95
      %s98 = sphi 0, %s97
      %s112 = sphi 0, %s98
      %s116 = sphi 0, %s116
      %s118 = sphi 0, %s116
      %s119 = sphi 0, %s118
      %s133 = sphi 0, %s119
      %s137 = sphi 0, %s137
      %s139 = sphi 0, %s137
      %s140 = sphi 0, %s139
      %s154 = sphi 0, %s140
      %s158 = sphi 0, %s158
      %s160 = sphi 0, %s158
      %s161 = sphi 0, %s160
      %s175 = sphi 0, %s161
      %s179 = sphi 0, %s179
      %s181 = sphi 0, %s179
      %s182 = sphi 0, %s181
      %s196 = sphi 0, %s182
      %s202 = sphi 0, %s204
      %s205 = sphi 0, %s202
      %s206 = sphi 0, %s205
      %s222 = sphi 0, %s206
    $region4: #{tpu_custom_call.1} parent=1 // loop_header_branch
      %24 = sbr.rel (%p22) target = $region8
    $region5: #{tpu_custom_call.1} parent=1 // loop_body
      %s26 = ssub.s32 %s21, 1
      %s27 = ssub.s32 %s21, 2
      %s34 = sadd.s32 1, %s29
      %p35 = scmp.ge.s32.totalorder %s34, 2
      %s36 = scalar_select %p35, 0, %s34
      %s37 = sadd.s32 1, %s28
      %s38 = scalar_select %p35, %s37, %s28
      %p39 = scmp.ge.s32.totalorder %s38, 1
      %s40 = scalar_select %p39, 0, %s38
      %s41 = ssub.s32 %s28, %s40
      %s42 = ssub.s32 %s29, %s36
      %s43 = sor.u32 %s41, %s42
      %p44 = scmp.eq.s32.totalorder %s43, 0
      %s46 = sadd.s32 %s45, 1
      %s47 = scalar_select %p44, %s45, %s46
      %p50 = pneg %p44
      %p51 = scmp.eq.s32.totalorder %s21, 1
      %p52 = por %p50, %p51
      %p53 = scmp.ne.s32.totalorder %s45, %s48
      %p54 = scmp.eq.s32.totalorder %s21, 0
      %p55 = por %p53, %p54
      %p56 = scmp.ne.s32.totalorder %s45, %s48
      %p57 = scmp.eq.s32.totalorder %s26, 1
      %p58 = por %p56, %p57
      %p59 = scmp.ne.s32.totalorder %s48, %s49
      %p60 = scmp.eq.s32.totalorder %s26, 0
      %p61 = por %p59, %p60
      %p62 = scmp.ne.s32.totalorder %s48, %s49
      %p63 = scmp.eq.s32.totalorder %s27, 1
      %p64 = por %p62, %p63
      %p66 = scmp.ne.s32.totalorder %s49, %s65
      %p67 = scmp.eq.s32.totalorder %s27, 0
      %p68 = por %p66, %p67
      %s69 = ssub.s32 %s29, %s36
      %p70 = scmp.eq.s32.totalorder %s69, 0
      %s72 = sadd.s32 %s71, 1
      %s73 = scalar_select %p70, %s71, %s72
      %p76 = pneg %p70
      %p77 = scmp.eq.s32.totalorder %s21, 1
      %p78 = por %p76, %p77
      %p79 = scmp.ne.s32.totalorder %s71, %s74
      %p80 = scmp.eq.s32.totalorder %s21, 0
      %p81 = por %p79, %p80
      %p82 = scmp.ne.s32.totalorder %s71, %s74
      %p83 = scmp.eq.s32.totalorder %s26, 1
      %p84 = por %p82, %p83
      %p85 = scmp.ne.s32.totalorder %s74, %s75
      %p86 = scmp.eq.s32.totalorder %s26, 0
      %p87 = por %p85, %p86
      %p88 = scmp.ne.s32.totalorder %s74, %s75
      %p89 = scmp.eq.s32.totalorder %s27, 1
      %p90 = por %p88, %p89
      %p92 = scmp.ne.s32.totalorder %s75, %s91
      %p93 = scmp.eq.s32.totalorder %s27, 0
      %p94 = por %p92, %p93
      %s96 = sadd.s32 %s95, 1
      %p99 = scmp.eq.s32.totalorder %s21, 1
      %p100 = scmp.ne.s32.totalorder %s95, %s97
      %p101 = scmp.eq.s32.totalorder %s21, 0
      %p102 = por %p100, %p101
      %p103 = scmp.ne.s32.totalorder %s95, %s97
      %p104 = scmp.eq.s32.totalorder %s26, 1
      %p105 = por %p103, %p104
      %p106 = scmp.ne.s32.totalorder %s97, %s98
      %p107 = scmp.eq.s32.totalorder %s26, 0
      %p108 = por %p106, %p107
      %p109 = scmp.ne.s32.totalorder %s97, %s98
      %p110 = scmp.eq.s32.totalorder %s27, 1
      %p111 = por %p109, %p110
      %p113 = scmp.ne.s32.totalorder %s98, %s112
      %p114 = scmp.eq.s32.totalorder %s27, 0
      %p115 = por %p113, %p114
      %s117 = sadd.s32 %s116, 1
      %p120 = scmp.eq.s32.totalorder %s21, 1
      %p121 = scmp.ne.s32.totalorder %s116, %s118
      %p122 = scmp.eq.s32.totalorder %s21, 0
      %p123 = por %p121, %p122
      %p124 = scmp.ne.s32.totalorder %s116, %s118
      %p125 = scmp.eq.s32.totalorder %s26, 1
      %p126 = por %p124, %p125
      %p127 = scmp.ne.s32.totalorder %s118, %s119
      %p128 = scmp.eq.s32.totalorder %s26, 0
      %p129 = por %p127, %p128
      %p130 = scmp.ne.s32.totalorder %s118, %s119
      %p131 = scmp.eq.s32.totalorder %s27, 1
      %p132 = por %p130, %p131
      %p134 = scmp.ne.s32.totalorder %s119, %s133
      %p135 = scmp.eq.s32.totalorder %s27, 0
      %p136 = por %p134, %p135
      %s138 = sadd.s32 %s137, 1
      %p141 = scmp.eq.s32.totalorder %s21, 1
      %p142 = scmp.ne.s32.totalorder %s137, %s139
      %p143 = scmp.eq.s32.totalorder %s21, 0
      %p144 = por %p142, %p143
      %p145 = scmp.ne.s32.totalorder %s137, %s139
      %p146 = scmp.eq.s32.totalorder %s26, 1
      %p147 = por %p145, %p146
      %p148 = scmp.ne.s32.totalorder %s139, %s140
      %p149 = scmp.eq.s32.totalorder %s26, 0
      %p150 = por %p148, %p149
      %p151 = scmp.ne.s32.totalorder %s139, %s140
      %p152 = scmp.eq.s32.totalorder %s27, 1
      %p153 = por %p151, %p152
      %p155 = scmp.ne.s32.totalorder %s140, %s154
      %p156 = scmp.eq.s32.totalorder %s27, 0
      %p157 = por %p155, %p156
      %s159 = sadd.s32 %s158, 1
      %p162 = scmp.eq.s32.totalorder %s21, 1
      %p163 = scmp.ne.s32.totalorder %s158, %s160
      %p164 = scmp.eq.s32.totalorder %s21, 0
      %p165 = por %p163, %p164
      %p166 = scmp.ne.s32.totalorder %s158, %s160
      %p167 = scmp.eq.s32.totalorder %s26, 1
      %p168 = por %p166, %p167
      %p169 = scmp.ne.s32.totalorder %s160, %s161
      %p170 = scmp.eq.s32.totalorder %s26, 0
      %p171 = por %p169, %p170
      %p172 = scmp.ne.s32.totalorder %s160, %s161
      %p173 = scmp.eq.s32.totalorder %s27, 1
      %p174 = por %p172, %p173
      %p176 = scmp.ne.s32.totalorder %s161, %s175
      %p177 = scmp.eq.s32.totalorder %s27, 0
      %p178 = por %p176, %p177
      %s180 = sadd.s32 %s179, 1
      %p183 = scmp.eq.s32.totalorder %s21, 1
      %p184 = scmp.ne.s32.totalorder %s179, %s181
      %p185 = scmp.eq.s32.totalorder %s21, 0
      %p186 = por %p184, %p185
      %p187 = scmp.ne.s32.totalorder %s179, %s181
      %p188 = scmp.eq.s32.totalorder %s26, 1
      %p189 = por %p187, %p188
      %p190 = scmp.ne.s32.totalorder %s181, %s182
      %p191 = scmp.eq.s32.totalorder %s26, 0
      %p192 = por %p190, %p191
      %p193 = scmp.ne.s32.totalorder %s181, %s182
      %p194 = scmp.eq.s32.totalorder %s27, 1
      %p195 = por %p193, %p194
      %p197 = scmp.ne.s32.totalorder %s182, %s196
      %p198 = scmp.eq.s32.totalorder %s27, 0
      %p199 = por %p197, %p198
      %s200 = ssub.s32 %s28, %s40
      %p201 = scmp.eq.s32.totalorder %s200, 0
      %s203 = sadd.s32 %s202, 1
      %s204 = scalar_select %p201, %s202, %s203
      %p207 = pneg %p201
      %p208 = scmp.eq.s32.totalorder %s21, 1
      %p209 = por %p207, %p208
      %p210 = scmp.ne.s32.totalorder %s202, %s205
      %p211 = scmp.eq.s32.totalorder %s21, 0
      %p212 = por %p210, %p211
      %p213 = scmp.ne.s32.totalorder %s202, %s205
      %p214 = scmp.eq.s32.totalorder %s26, 1
      %p215 = por %p213, %p214
      %p216 = scmp.ne.s32.totalorder %s205, %s206
      %p217 = scmp.eq.s32.totalorder %s26, 0
      %p218 = por %p216, %p217
      %p219 = scmp.ne.s32.totalorder %s205, %s206
      %p220 = scmp.eq.s32.totalorder %s27, 1
      %p221 = por %p219, %p220
      %p223 = scmp.ne.s32.totalorder %s206, %s222
      %p224 = scmp.eq.s32.totalorder %s27, 0
      %p225 = por %p223, %p224
      %p226 = scmp.le.s32.totalorder 1, %s21
      %p227 = scmp.lt.s32.totalorder %s21, 3
      %p228 = pnand %p226, %p227
      %p229 = pneg %p228
      // Predicated region
      $region9: #{tpu_custom_call.1} parent=5 // pred_check
        _
      $region10: #{tpu_custom_call.1} parent=5 // pred_check_branch
        %231 = sbr.rel (%p228) target = $region12
      $region11: #{tpu_custom_call.1} parent=5 // pred_region
        %s232 = ssub.s32 %s21, 1
        // Predicated region
        $region13: #{tpu_custom_call.1} parent=11 // pred_check
          %p233 = pneg %p108
        $region14: #{tpu_custom_call.1} parent=11 // pred_check_branch
          %235 = sbr.rel (%p233) target = $region16
        $region15: #{tpu_custom_call.1} parent=11 // pred_region
          _
        $region16: #{tpu_custom_call.1} parent=11 // pred_fallthru
          _
        // Predicated region
        $region17: #{tpu_custom_call.1} parent=11 // pred_check
          %p236 = pneg %p129
        $region18: #{tpu_custom_call.1} parent=11 // pred_check_branch
          %238 = sbr.rel (%p236) target = $region20
        $region19: #{tpu_custom_call.1} parent=11 // pred_region
          %240 = vsyncadd [#allocation7], 0
          %s241 = sshll.u32 %s3, 4
          %s242 = int_to_ptr.hbm [resolvable:$true] %s241
          %s243 = sshll.u32 [#allocation8], 4
          %s244 = int_to_ptr.vmem [resolvable:$true] %s243
          %249 = dma.hbm_to_vmem [thread:$0]  %s242, 1024, %s244, [#allocation7], 64, 64, 4
        $region20: #{tpu_custom_call.1} parent=11 // pred_fallthru
          _
        // Predicated region
        $region21: #{tpu_custom_call.1} parent=11 // pred_check
          %p250 = pneg %p150
        $region22: #{tpu_custom_call.1} parent=11 // pred_check_branch
          %252 = sbr.rel (%p250) target = $region24
        $region23: #{tpu_custom_call.1} parent=11 // pred_region
          _
        $region24: #{tpu_custom_call.1} parent=11 // pred_fallthru
          _
        // Predicated region
        $region25: #{tpu_custom_call.1} parent=11 // pred_check
          %p253 = pneg %p171
        $region26: #{tpu_custom_call.1} parent=11 // pred_check_branch
          %255 = sbr.rel (%p253) target = $region28
        $region27: #{tpu_custom_call.1} parent=11 // pred_region
          %257 = vsyncadd [#allocation10], 0
          %s258 = sshll.u32 %s5, 4
          %s259 = int_to_ptr.hbm [resolvable:$true] %s258
          %s260 = sshll.u32 [#allocation9], 4
          %s261 = int_to_ptr.vmem [resolvable:$true] %s260
          %266 = dma.hbm_to_vmem [thread:$0]  %s259, 1024, %s261, [#allocation10], 64, 64, 4
        $region28: #{tpu_custom_call.1} parent=11 // pred_fallthru
          _
        // Predicated region
        $region29: #{tpu_custom_call.1} parent=11 // pred_check
          %p267 = pneg %p192
        $region30: #{tpu_custom_call.1} parent=11 // pred_check_branch
          %269 = sbr.rel (%p267) target = $region32
        $region31: #{tpu_custom_call.1} parent=11 // pred_region
          _
        $region32: #{tpu_custom_call.1} parent=11 // pred_fallthru
          _
      $region12: #{tpu_custom_call.1} parent=5 // pred_fallthru
        _
      %p270 = scmp.lt.s32.totalorder %s21, 2
      // Predicated region
      $region33: #{tpu_custom_call.1} parent=5 // pred_check
        %p271 = pneg %p270
      $region34: #{tpu_custom_call.1} parent=5 // pred_check_branch
        %273 = sbr.rel (%p271) target = $region36
      $region35: #{tpu_custom_call.1} parent=5 // pred_region
        // Predicated region
        $region37: #{tpu_custom_call.1} parent=35 // pred_check
          %p274 = pneg %p55
        $region38: #{tpu_custom_call.1} parent=35 // pred_check_branch
          %276 = sbr.rel (%p274) target = $region40
        $region39: #{tpu_custom_call.1} parent=35 // pred_region
          %s277 = sand.u32 %s45, 1
          %s278 = scalar_lea.sflag [#allocation4], %s277
          %s279 = sand.u32 %s45, 1
          %s280 = smul.addr %s279, 16
          %s281 = scalar_lea.vmem [#allocation3], %s280
          %s282 = smul.u32 4, %s29
          %284 = vsyncadd %s278, 0
          %s285 = smul.addr %s28, 8
          %s286 = sadd.s32 %s282, %s285
          %s287 = smul.addr %s286, 4
          %s288 = scalar_lea.hbm %s0, %s287
          %s290 = sshll.u32 %s288, 4
          %s291 = int_to_ptr.hbm [resolvable:$true] %s290
          %s292 = sshll.u32 %s281, 4
          %s293 = int_to_ptr.vmem [resolvable:$true] %s292
          %295 = dma.hbm_to_vmem [thread:$0]  %s291, 256, %s293, %s278
        $region40: #{tpu_custom_call.1} parent=35 // pred_fallthru
          _
        // Predicated region
        $region41: #{tpu_custom_call.1} parent=35 // pred_check
          %p296 = pneg %p81
        $region42: #{tpu_custom_call.1} parent=35 // pred_check_branch
          %298 = sbr.rel (%p296) target = $region44
        $region43: #{tpu_custom_call.1} parent=35 // pred_region
          %s299 = sand.u32 %s21, 1
          %s300 = scalar_lea.sflag [#allocation7], %s299
          %s301 = sand.u32 %s71, 1
          %s302 = smul.addr %s301, 256
          %s303 = scalar_lea.vmem [#allocation6], %s302
          %s304 = smul.u32 64, %s29
          %306 = vsyncadd %s300, 0
          %s307 = smul.addr %s304, 4
          %s308 = scalar_lea.hbm %s1, %s307
          %s309 = sshll.u32 %s308, 4
          %s310 = int_to_ptr.hbm [resolvable:$true] %s309
          %s311 = sshll.u32 %s303, 4
          %s312 = int_to_ptr.vmem [resolvable:$true] %s311
          %317 = dma.hbm_to_vmem [thread:$0]  %s310, 4096, %s312, %s300, 64, 64, 4
        $region44: #{tpu_custom_call.1} parent=35 // pred_fallthru
          _
      $region36: #{tpu_custom_call.1} parent=5 // pred_fallthru
        _
      %p318 = scmp.le.s32.totalorder 1, %s21
      %p319 = scmp.lt.s32.totalorder %s21, 3
      %p320 = pnand %p318, %p319
      %p321 = pneg %p320
      // Predicated region
      $region45: #{tpu_custom_call.1} parent=5 // pred_check
        _
      $region46: #{tpu_custom_call.1} parent=5 // pred_check_branch
        %323 = sbr.rel (%p320) target = $region48
      $region47: #{tpu_custom_call.1} parent=5 // pred_region
        %s324 = ssub.s32 %s21, 1
        %s325 = sand.u32 %s48, 1
        %s326 = scalar_lea.sflag [#allocation4], %s325
        %s327 = sand.u32 %s48, 1
        %s328 = smul.addr %s327, 16
        %s329 = scalar_lea.vmem [#allocation3], %s328
        // Predicated region
        $region49: #{tpu_custom_call.1} parent=47 // pred_check
          %p330 = pneg %p61
        $region50: #{tpu_custom_call.1} parent=47 // pred_check_branch
          %332 = sbr.rel (%p330) target = $region52
        $region51: #{tpu_custom_call.1} parent=47 // pred_region
          %334 = dma.done %s326, 256
        $region52: #{tpu_custom_call.1} parent=47 // pred_fallthru
          _
        %s335 = sand.u32 %s26, 1
        %s336 = scalar_lea.sflag [#allocation7], %s335
        %s337 = sand.u32 %s74, 1
        %s338 = smul.addr %s337, 256
        %s339 = scalar_lea.vmem [#allocation6], %s338
        // Predicated region
        $region53: #{tpu_custom_call.1} parent=47 // pred_check
          %p340 = pneg %p87
        $region54: #{tpu_custom_call.1} parent=47 // pred_check_branch
          %342 = sbr.rel (%p340) target = $region56
        $region55: #{tpu_custom_call.1} parent=47 // pred_region
          %344 = dma.done %s336, 4096
        $region56: #{tpu_custom_call.1} parent=47 // pred_fallthru
          _
        // Predicated region
        $region57: #{tpu_custom_call.1} parent=47 // pred_check
          %p345 = pneg %p129
        $region58: #{tpu_custom_call.1} parent=47 // pred_check_branch
          %347 = sbr.rel (%p345) target = $region60
        $region59: #{tpu_custom_call.1} parent=47 // pred_region
          %349 = dma.done [#allocation7], 1024
        $region60: #{tpu_custom_call.1} parent=47 // pred_fallthru
          _
        // Predicated region
        $region61: #{tpu_custom_call.1} parent=47 // pred_check
          %p350 = pneg %p171
        $region62: #{tpu_custom_call.1} parent=47 // pred_check_branch
          %352 = sbr.rel (%p350) target = $region64
        $region63: #{tpu_custom_call.1} parent=47 // pred_region
          %354 = dma.done [#allocation10], 1024
        $region64: #{tpu_custom_call.1} parent=47 // pred_fallthru
          _
        %s355 = sand.u32 %s48, 1
        %s356 = scalar_lea.sflag [#allocation4], %s355
        %s357 = sand.u32 %s48, 1
        %s358 = smul.addr %s357, 16
        %s359 = scalar_lea.vmem [#allocation3], %s358
        %p360 = pneg %p61
        %p361 = pneg %p58
        %s362 = sand.u32 %s26, 1
        %s363 = scalar_lea.sflag [#allocation7], %s362
        %s364 = sand.u32 %s74, 1
        %s365 = smul.addr %s364, 256
        %s366 = scalar_lea.vmem [#allocation6], %s365
        %p367 = pneg %p87
        %p368 = pneg %p84
        %p369 = pneg %p108
        %p370 = pneg %p105
        %p371 = pneg %p129
        %p372 = pneg %p126
        %p373 = pneg %p150
        %p374 = pneg %p147
        %p375 = pneg %p171
        %p376 = pneg %p168
        %p377 = pneg %p192
        %p378 = pneg %p189
        %p379 = pneg %p218
        %p380 = pneg %p215
        %s381 = smul.u32 4, %s31
        %s382 = smul.u32 64, %s31
        %p383 = scmp.eq.s32.totalorder %s31, 0
        // Predicated region
        $region65: #{tpu_custom_call.1} parent=47 // pred_check
          %p384 = pneg %p383
        $region66: #{tpu_custom_call.1} parent=47 // pred_check_branch
          %386 = sbr.rel (%p384) target = $region68
        $region67: #{tpu_custom_call.1} parent=47 // pred_region
          %387 = vst [vmem:[#allocation2] sm:$0xff] 0.0
        $region68: #{tpu_custom_call.1} parent=47 // pred_fallthru
          _
        %v388 = vld [vmem:[#allocation2] sm:$0xff]
        %v389 = vld [vmem:[%s329] sm:$0xff]
        %v390 = vld [vmem:[%s329 + $0x8] sm:$0xff]
        %v391 = vld [vmem:[%s339] sm:$0xf]
        %v392 = vld [vmem:[%s339 + $0x4] sm:$0xf]
        %v393 = vld [vmem:[%s339 + $0x8] sm:$0xf]
        %v394 = vld [vmem:[%s339 + $0xc] sm:$0xf]
        %v395 = vld [vmem:[%s339 + $0x10] sm:$0xf]
        %v396 = vld [vmem:[%s339 + $0x14] sm:$0xf]
        %v397 = vld [vmem:[%s339 + $0x18] sm:$0xf]
        %v398 = vld [vmem:[%s339 + $0x1c] sm:$0xf]
        %v399 = vld [vmem:[%s339 + $0x20] sm:$0xf]
        %v400 = vld [vmem:[%s339 + $0x24] sm:$0xf]
        %v401 = vld [vmem:[%s339 + $0x28] sm:$0xf]
        %v402 = vld [vmem:[%s339 + $0x2c] sm:$0xf]
        %v403 = vld [vmem:[%s339 + $0x30] sm:$0xf]
        %v404 = vld [vmem:[%s339 + $0x34] sm:$0xf]
        %v405 = vld [vmem:[%s339 + $0x38] sm:$0xf]
        %v406 = vld [vmem:[%s339 + $0x3c] sm:$0xf]
        %v407 = vld [vmem:[%s339 + $0x40] sm:$0xf]
        %v408 = vld [vmem:[%s339 + $0x44] sm:$0xf]
        %v409 = vld [vmem:[%s339 + $0x48] sm:$0xf]
        %v410 = vld [vmem:[%s339 + $0x4c] sm:$0xf]
        %v411 = vld [vmem:[%s339 + $0x50] sm:$0xf]
        %v412 = vld [vmem:[%s339 + $0x54] sm:$0xf]
        %v413 = vld [vmem:[%s339 + $0x58] sm:$0xf]
        %v414 = vld [vmem:[%s339 + $0x5c] sm:$0xf]
        %v415 = vld [vmem:[%s339 + $0x60] sm:$0xf]
        %v416 = vld [vmem:[%s339 + $0x64] sm:$0xf]
        %v417 = vld [vmem:[%s339 + $0x68] sm:$0xf]
        %v418 = vld [vmem:[%s339 + $0x6c] sm:$0xf]
        %v419 = vld [vmem:[%s339 + $0x70] sm:$0xf]
        %v420 = vld [vmem:[%s339 + $0x74] sm:$0xf]
        %v421 = vld [vmem:[%s339 + $0x78] sm:$0xf]
        %v422 = vld [vmem:[%s339 + $0x7c] sm:$0xf]
        %v423 = vld [vmem:[%s339 + $0x80] sm:$0xf]
        %v424 = vld [vmem:[%s339 + $0x84] sm:$0xf]
        %v425 = vld [vmem:[%s339 + $0x88] sm:$0xf]
        %v426 = vld [vmem:[%s339 + $0x8c] sm:$0xf]
        %v427 = vld [vmem:[%s339 + $0x90] sm:$0xf]
        %v428 = vld [vmem:[%s339 + $0x94] sm:$0xf]
        %v429 = vld [vmem:[%s339 + $0x98] sm:$0xf]
        %v430 = vld [vmem:[%s339 + $0x9c] sm:$0xf]
        %v431 = vld [vmem:[%s339 + $0xa0] sm:$0xf]
        %v432 = vld [vmem:[%s339 + $0xa4] sm:$0xf]
        %v433 = vld [vmem:[%s339 + $0xa8] sm:$0xf]
        %v434 = vld [vmem:[%s339 + $0xac] sm:$0xf]
        %v435 = vld [vmem:[%s339 + $0xb0] sm:$0xf]
        %v436 = vld [vmem:[%s339 + $0xb4] sm:$0xf]
        %v437 = vld [vmem:[%s339 + $0xb8] sm:$0xf]
        %v438 = vld [vmem:[%s339 + $0xbc] sm:$0xf]
        %v439 = vld [vmem:[%s339 + $0xc0] sm:$0xf]
        %v440 = vld [vmem:[%s339 + $0xc4] sm:$0xf]
        %v441 = vld [vmem:[%s339 + $0xc8] sm:$0xf]
        %v442 = vld [vmem:[%s339 + $0xcc] sm:$0xf]
        %v443 = vld [vmem:[%s339 + $0xd0] sm:$0xf]
        %v444 = vld [vmem:[%s339 + $0xd4] sm:$0xf]
        %v445 = vld [vmem:[%s339 + $0xd8] sm:$0xf]
        %v446 = vld [vmem:[%s339 + $0xdc] sm:$0xf]
        %v447 = vld [vmem:[%s339 + $0xe0] sm:$0xf]
        %v448 = vld [vmem:[%s339 + $0xe4] sm:$0xf]
        %v449 = vld [vmem:[%s339 + $0xe8] sm:$0xf]
        %v450 = vld [vmem:[%s339 + $0xec] sm:$0xf]
        %v451 = vld [vmem:[%s339 + $0xf0] sm:$0xf]
        %v452 = vld [vmem:[%s339 + $0xf4] sm:$0xf]
        %v453 = vld [vmem:[%s339 + $0xf8] sm:$0xf]
        %v454 = vld [vmem:[%s339 + $0xfc] sm:$0xf]
        %v457 = vunpack.c.l.b16 %v389
        %v458 = vunpack.c.h.b16 %v389
        %v459 = vunpack.c.l.b16 %v390
        %v460 = vunpack.c.h.b16 %v390
        %v461 = vpack.c.b16 %v457, %v457
        %v462 = vpack.c.b16 %v458, %v458
        %v463 = vpack.c.b16 %v459, %v459
        %v464 = vpack.c.b16 %v460, %v460
        %v533 = vunpack.c.l.b16 %v391
        %v534 = vunpack.c.l.b16 %v392
        %v535 = vunpack.c.l.b16 %v393
        %v536 = vunpack.c.l.b16 %v394
        %v537 = vunpack.c.l.b16 %v395
        %v538 = vunpack.c.l.b16 %v396
        %v539 = vunpack.c.l.b16 %v397
        %v540 = vunpack.c.l.b16 %v398
        %v541 = vunpack.c.l.b16 %v399
        %v542 = vunpack.c.l.b16 %v400
        %v543 = vunpack.c.l.b16 %v401
        %v544 = vunpack.c.l.b16 %v402
        %v545 = vunpack.c.l.b16 %v403
        %v546 = vunpack.c.l.b16 %v404
        %v547 = vunpack.c.l.b16 %v405
        %v548 = vunpack.c.l.b16 %v406
        %v549 = vunpack.c.l.b16 %v407
        %v550 = vunpack.c.l.b16 %v408
        %v551 = vunpack.c.l.b16 %v409
        %v552 = vunpack.c.l.b16 %v410
        %v553 = vunpack.c.l.b16 %v411
        %v554 = vunpack.c.l.b16 %v412
        %v555 = vunpack.c.l.b16 %v413
        %v556 = vunpack.c.l.b16 %v414
        %v557 = vunpack.c.l.b16 %v415
        %v558 = vunpack.c.l.b16 %v416
        %v559 = vunpack.c.l.b16 %v417
        %v560 = vunpack.c.l.b16 %v418
        %v561 = vunpack.c.l.b16 %v419
        %v562 = vunpack.c.l.b16 %v420
        %v563 = vunpack.c.l.b16 %v421
        %v564 = vunpack.c.l.b16 %v422
        %v565 = vunpack.c.l.b16 %v423
        %v566 = vunpack.c.l.b16 %v424
        %v567 = vunpack.c.l.b16 %v425
        %v568 = vunpack.c.l.b16 %v426
        %v569 = vunpack.c.l.b16 %v427
        %v570 = vunpack.c.l.b16 %v428
        %v571 = vunpack.c.l.b16 %v429
        %v572 = vunpack.c.l.b16 %v430
        %v573 = vunpack.c.l.b16 %v431
        %v574 = vunpack.c.l.b16 %v432
        %v575 = vunpack.c.l.b16 %v433
        %v576 = vunpack.c.l.b16 %v434
        %v577 = vunpack.c.l.b16 %v435
        %v578 = vunpack.c.l.b16 %v436
        %v579 = vunpack.c.l.b16 %v437
        %v580 = vunpack.c.l.b16 %v438
        %v581 = vunpack.c.l.b16 %v439
        %v582 = vunpack.c.l.b16 %v440
        %v583 = vunpack.c.l.b16 %v441
        %v584 = vunpack.c.l.b16 %v442
        %v585 = vunpack.c.l.b16 %v443
        %v586 = vunpack.c.l.b16 %v444
        %v587 = vunpack.c.l.b16 %v445
        %v588 = vunpack.c.l.b16 %v446
        %v589 = vunpack.c.l.b16 %v447
        %v590 = vunpack.c.l.b16 %v448
        %v591 = vunpack.c.l.b16 %v449
        %v592 = vunpack.c.l.b16 %v450
        %v593 = vunpack.c.l.b16 %v451
        %v594 = vunpack.c.l.b16 %v452
        %v595 = vunpack.c.l.b16 %v453
        %v596 = vunpack.c.l.b16 %v454
        %v597 = vpack.c.b16 %v534, %v533
        %v598 = vpack.c.b16 %v536, %v535
        %v599 = vpack.c.b16 %v538, %v537
        %v600 = vpack.c.b16 %v540, %v539
        %v601 = vpack.c.b16 %v542, %v541
        %v602 = vpack.c.b16 %v544, %v543
        %v603 = vpack.c.b16 %v546, %v545
        %v604 = vpack.c.b16 %v548, %v547
        %v605 = vpack.c.b16 %v550, %v549
        %v606 = vpack.c.b16 %v552, %v551
        %v607 = vpack.c.b16 %v554, %v553
        %v608 = vpack.c.b16 %v556, %v555
        %v609 = vpack.c.b16 %v558, %v557
        %v610 = vpack.c.b16 %v560, %v559
        %v611 = vpack.c.b16 %v562, %v561
        %v612 = vpack.c.b16 %v564, %v563
        %v613 = vpack.c.b16 %v566, %v565
        %v614 = vpack.c.b16 %v568, %v567
        %v615 = vpack.c.b16 %v570, %v569
        %v616 = vpack.c.b16 %v572, %v571
        %v617 = vpack.c.b16 %v574, %v573
        %v618 = vpack.c.b16 %v576, %v575
        %v619 = vpack.c.b16 %v578, %v577
        %v620 = vpack.c.b16 %v580, %v579
        %v621 = vpack.c.b16 %v582, %v581
        %v622 = vpack.c.b16 %v584, %v583
        %v623 = vpack.c.b16 %v586, %v585
        %v624 = vpack.c.b16 %v588, %v587
        %v625 = vpack.c.b16 %v590, %v589
        %v626 = vpack.c.b16 %v592, %v591
        %v627 = vpack.c.b16 %v594, %v593
        %v628 = vpack.c.b16 %v596, %v595
        %661 = vmatpush.bf16.msra.mxu0 %v604
        %662 = vmatpush.bf16.msra.mxu0 %v603
        %663 = vmatpush.bf16.msra.mxu0 %v602
        %664 = vmatpush.bf16.msra.mxu0 %v601
        %665 = vmatpush.bf16.msra.mxu0 %v600
        %666 = vmatpush.bf16.msra.mxu0 %v599
        %667 = vmatpush.bf16.msra.mxu0 %v598
        %668 = vmatpush.bf16.msra.mxu0 %v597
        %669 = vmatmul.bf16.gmra.mxu0 %v461
        %v670 = vpop.f32.mrf.mxu0
        %v671 = vadd.f32 0.0, %v670
        %v672 = vpop.f32.mrf.mxu0
        %673 = vdwg.mxu0
        %674 = vmatpush.bf16.msra.mxu0 %v612
        %675 = vmatpush.bf16.msra.mxu0 %v611
        %676 = vmatpush.bf16.msra.mxu0 %v610
        %677 = vmatpush.bf16.msra.mxu0 %v609
        %678 = vmatpush.bf16.msra.mxu0 %v608
        %679 = vmatpush.bf16.msra.mxu0 %v607
        %680 = vmatpush.bf16.msra.mxu0 %v606
        %681 = vmatpush.bf16.msra.mxu0 %v605
        %682 = vmatmul.bf16.gmra.mxu0 %v462
        %v683 = vpop.f32.mrf.mxu0
        %v684 = vadd.f32 %v671, %v683
        %v685 = vpop.f32.mrf.mxu0
        %686 = vdwg.mxu0
        %687 = vmatpush.bf16.msra.mxu0 %v620
        %688 = vmatpush.bf16.msra.mxu0 %v619
        %689 = vmatpush.bf16.msra.mxu0 %v618
        %690 = vmatpush.bf16.msra.mxu0 %v617
        %691 = vmatpush.bf16.msra.mxu0 %v616
        %692 = vmatpush.bf16.msra.mxu0 %v615
        %693 = vmatpush.bf16.msra.mxu0 %v614
        %694 = vmatpush.bf16.msra.mxu0 %v613
        %695 = vmatmul.bf16.gmra.mxu0 %v463
        %v696 = vpop.f32.mrf.mxu0
        %v697 = vadd.f32 %v684, %v696
        %v698 = vpop.f32.mrf.mxu0
        %699 = vdwg.mxu0
        %700 = vmatpush.bf16.msra.mxu0 %v628
        %701 = vmatpush.bf16.msra.mxu0 %v627
        %702 = vmatpush.bf16.msra.mxu0 %v626
        %703 = vmatpush.bf16.msra.mxu0 %v625
        %704 = vmatpush.bf16.msra.mxu0 %v624
        %705 = vmatpush.bf16.msra.mxu0 %v623
        %706 = vmatpush.bf16.msra.mxu0 %v622
        %707 = vmatpush.bf16.msra.mxu0 %v621
        %708 = vmatmul.bf16.gmra.mxu0 %v464
        %v709 = vpop.f32.mrf.mxu0
        %v710 = vadd.f32 %v697, %v709
        %v711 = vpop.f32.mrf.mxu0
        %712 = vdwg.mxu0
        %v713 = vadd.f32 %v388, %v710
        %714 = vst [vmem:[#allocation2] sm:$0xff] %v713
        %p715 = scmp.eq.s32.totalorder %s31, 1
        // Predicated region
        $region69: #{tpu_custom_call.1} parent=47 // pred_check
          %p716 = pneg %p715
        $region70: #{tpu_custom_call.1} parent=47 // pred_check_branch
          %718 = sbr.rel (%p716) target = $region72
        $region71: #{tpu_custom_call.1} parent=47 // pred_region
          %v719 = vld [vmem:[#allocation2] sm:$0xff]
          %v720 = vld [vmem:[%s2] sm:$0x1]
          %v722 = vperm.slane %v720, 0
          %v724 = vadd.f32 %v719, %v722
          %v725 = vpack.c.bf16 %v724, %v724
          %v726 = vld [vmem:[#allocation8] sm:$0xf]
          %v727 = vld [vmem:[#allocation8 + $0x4] sm:$0xf]
          %v728 = vld [vmem:[#allocation8 + $0x8] sm:$0xf]
          %v729 = vld [vmem:[#allocation8 + $0xc] sm:$0xf]
          %v730 = vld [vmem:[#allocation8 + $0x10] sm:$0xf]
          %v731 = vld [vmem:[#allocation8 + $0x14] sm:$0xf]
          %v732 = vld [vmem:[#allocation8 + $0x18] sm:$0xf]
          %v733 = vld [vmem:[#allocation8 + $0x1c] sm:$0xf]
          %v734 = vld [vmem:[#allocation8 + $0x20] sm:$0xf]
          %v735 = vld [vmem:[#allocation8 + $0x24] sm:$0xf]
          %v736 = vld [vmem:[#allocation8 + $0x28] sm:$0xf]
          %v737 = vld [vmem:[#allocation8 + $0x2c] sm:$0xf]
          %v738 = vld [vmem:[#allocation8 + $0x30] sm:$0xf]
          %v739 = vld [vmem:[#allocation8 + $0x34] sm:$0xf]
          %v740 = vld [vmem:[#allocation8 + $0x38] sm:$0xf]
          %v741 = vld [vmem:[#allocation8 + $0x3c] sm:$0xf]
          %v742 = vld [vmem:[%s4] sm:$0x1]
          %v744 = vperm.slane %v742, 0
          %v762 = vunpack.c.l.b16 %v726
          %v763 = vunpack.c.l.b16 %v727
          %v764 = vunpack.c.l.b16 %v728
          %v765 = vunpack.c.l.b16 %v729
          %v766 = vunpack.c.l.b16 %v730
          %v767 = vunpack.c.l.b16 %v731
          %v768 = vunpack.c.l.b16 %v732
          %v769 = vunpack.c.l.b16 %v733
          %v770 = vunpack.c.l.b16 %v734
          %v771 = vunpack.c.l.b16 %v735
          %v772 = vunpack.c.l.b16 %v736
          %v773 = vunpack.c.l.b16 %v737
          %v774 = vunpack.c.l.b16 %v738
          %v775 = vunpack.c.l.b16 %v739
          %v776 = vunpack.c.l.b16 %v740
          %v777 = vunpack.c.l.b16 %v741
          %v778 = vpack.c.b16 %v763, %v762
          %v779 = vpack.c.b16 %v765, %v764
          %v780 = vpack.c.b16 %v767, %v766
          %v781 = vpack.c.b16 %v769, %v768
          %v782 = vpack.c.b16 %v771, %v770
          %v783 = vpack.c.b16 %v773, %v772
          %v784 = vpack.c.b16 %v775, %v774
          %v785 = vpack.c.b16 %v777, %v776
          %794 = vmatpush.bf16.msra.mxu0 %v785
          %795 = vmatpush.bf16.msra.mxu0 %v784
          %796 = vmatpush.bf16.msra.mxu0 %v783
          %797 = vmatpush.bf16.msra.mxu0 %v782
          %798 = vmatpush.bf16.msra.mxu0 %v781
          %799 = vmatpush.bf16.msra.mxu0 %v780
          %800 = vmatpush.bf16.msra.mxu0 %v779
          %801 = vmatpush.bf16.msra.mxu0 %v778
          %802 = vmatmul.bf16.gmra.mxu0 %v725
          %v803 = vpop.f32.mrf.mxu0
          %v804 = vadd.f32 %v744, %v803
          %v805 = vpop.f32.mrf.mxu0
          %806 = vdwg.mxu0
          %v807 = vmax.f32 %v804, 0.0
          %v808 = vpack.c.bf16 %v807, %v807
          %v809 = vld [vmem:[#allocation9] sm:$0xf]
          %v810 = vld [vmem:[#allocation9 + $0x4] sm:$0xf]
          %v811 = vld [vmem:[#allocation9 + $0x8] sm:$0xf]
          %v812 = vld [vmem:[#allocation9 + $0xc] sm:$0xf]
          %v813 = vld [vmem:[#allocation9 + $0x10] sm:$0xf]
          %v814 = vld [vmem:[#allocation9 + $0x14] sm:$0xf]
          %v815 = vld [vmem:[#allocation9 + $0x18] sm:$0xf]
          %v816 = vld [vmem:[#allocation9 + $0x1c] sm:$0xf]
          %v817 = vld [vmem:[#allocation9 + $0x20] sm:$0xf]
          %v818 = vld [vmem:[#allocation9 + $0x24] sm:$0xf]
          %v819 = vld [vmem:[#allocation9 + $0x28] sm:$0xf]
          %v820 = vld [vmem:[#allocation9 + $0x2c] sm:$0xf]
          %v821 = vld [vmem:[#allocation9 + $0x30] sm:$0xf]
          %v822 = vld [vmem:[#allocation9 + $0x34] sm:$0xf]
          %v823 = vld [vmem:[#allocation9 + $0x38] sm:$0xf]
          %v824 = vld [vmem:[#allocation9 + $0x3c] sm:$0xf]
          %v825 = vld [vmem:[%s6] sm:$0x1]
          %v827 = vperm.slane %v825, 0
          %v845 = vunpack.c.l.b16 %v809
          %v846 = vunpack.c.l.b16 %v810
          %v847 = vunpack.c.l.b16 %v811
          %v848 = vunpack.c.l.b16 %v812
          %v849 = vunpack.c.l.b16 %v813
          %v850 = vunpack.c.l.b16 %v814
          %v851 = vunpack.c.l.b16 %v815
          %v852 = vunpack.c.l.b16 %v816
          %v853 = vunpack.c.l.b16 %v817
          %v854 = vunpack.c.l.b16 %v818
          %v855 = vunpack.c.l.b16 %v819
          %v856 = vunpack.c.l.b16 %v820
          %v857 = vunpack.c.l.b16 %v821
          %v858 = vunpack.c.l.b16 %v822
          %v859 = vunpack.c.l.b16 %v823
          %v860 = vunpack.c.l.b16 %v824
          %v861 = vpack.c.b16 %v846, %v845
          %v862 = vpack.c.b16 %v848, %v847
          %v863 = vpack.c.b16 %v850, %v849
          %v864 = vpack.c.b16 %v852, %v851
          %v865 = vpack.c.b16 %v854, %v853
          %v866 = vpack.c.b16 %v856, %v855
          %v867 = vpack.c.b16 %v858, %v857
          %v868 = vpack.c.b16 %v860, %v859
          %877 = vmatpush.bf16.msra.mxu0 %v868
          %878 = vmatpush.bf16.msra.mxu0 %v867
          %879 = vmatpush.bf16.msra.mxu0 %v866
          %880 = vmatpush.bf16.msra.mxu0 %v865
          %881 = vmatpush.bf16.msra.mxu0 %v864
          %882 = vmatpush.bf16.msra.mxu0 %v863
          %883 = vmatpush.bf16.msra.mxu0 %v862
          %884 = vmatpush.bf16.msra.mxu0 %v861
          %885 = vmatmul.bf16.gmra.mxu0 %v808
          %v886 = vpop.f32.mrf.mxu0
          %v887 = vadd.f32 %v827, %v886
          %v888 = vpop.f32.mrf.mxu0
          %889 = vdwg.mxu0
          %890 = vst [vmem:[#allocation11] sm:$0xff] %v887
        $region72: #{tpu_custom_call.1} parent=47 // pred_fallthru
          _
        // Predicated region
        $region73: #{tpu_custom_call.1} parent=47 // pred_check
          %p891 = pneg %p215
        $region74: #{tpu_custom_call.1} parent=47 // pred_check_branch
          %893 = sbr.rel (%p891) target = $region76
        $region75: #{tpu_custom_call.1} parent=47 // pred_region
          %895 = vsyncadd [#allocation5], 0
          %s896 = smul.addr %s30, 8
          %s897 = scalar_lea.hbm %s7, %s896
          %s899 = sshll.u32 [#allocation11], 4
          %s900 = int_to_ptr.vmem [resolvable:$true] %s899
          %s901 = sshll.u32 %s897, 4
          %s902 = int_to_ptr.hbm [resolvable:$true] %s901
          %904 = dma.vmem_to_hbm [thread:$0]  %s900, 128, %s902, [#allocation5]
        $region76: #{tpu_custom_call.1} parent=47 // pred_fallthru
          _
        // Predicated region
        $region77: #{tpu_custom_call.1} parent=47 // pred_check
          %p905 = pneg %p215
        $region78: #{tpu_custom_call.1} parent=47 // pred_check_branch
          %907 = sbr.rel (%p905) target = $region80
        $region79: #{tpu_custom_call.1} parent=47 // pred_region
          %909 = dma.done [#allocation5], 128
        $region80: #{tpu_custom_call.1} parent=47 // pred_fallthru
          _
      $region48: #{tpu_custom_call.1} parent=5 // pred_fallthru
        _
      %p910 = scmp.le.s32.totalorder 2, %s21
      // Predicated region
      $region81: #{tpu_custom_call.1} parent=5 // pred_check
        %p911 = pneg %p910
      $region82: #{tpu_custom_call.1} parent=5 // pred_check_branch
        %913 = sbr.rel (%p911) target = $region84
      $region83: #{tpu_custom_call.1} parent=5 // pred_region
        %s914 = ssub.s32 %s21, 2
      $region84: #{tpu_custom_call.1} parent=5 // pred_fallthru
        _
    $region6: #{tpu_custom_call.1} parent=1 // loop_footer
      %s25 = sadd.s32 1, %s21
    $region7: #{tpu_custom_call.1} parent=1 // loop_footer_branch
      %20 = sbr.rel target = $region3
    $region8: #{tpu_custom_call.1} parent=1 // loop_exit
      _
    %915 = vsyncpa [#allocation4], 1
    %s916 = scalar_lea.sflag [#allocation4], 1
    %917 = vsyncpa %s916, 1
    %918 = vsyncpa [#allocation7], 1
    %s919 = scalar_lea.sflag [#allocation7], 1
    %920 = vsyncpa %s919, 1
    %921 = vsyncpa [#allocation10], 1
    %922 = vsyncpa [#allocation5], 1
    %s923 = scalar_lea.sflag [#allocation5], 1
    %924 = vsyncpa %s923, 1

</llo_original>
